<compile_context>
chip_gen: v7x
topology: tpu7x:2x2x1
jax: 0.10.0
libtpu: 0.0.40
codegen_flags: <defaults>
</compile_context>

<pallas_src>
import jax
import jax.numpy as jnp
from jax.experimental import pallas as pl
from jax.experimental.pallas import tpu as pltpu

EPS = 1e-5  # PyTorch BatchNorm1d default eps


def simple_gcn_forward(x, adj, params):
    """x: (B, 1, N) float32 (PyTorch NCW), adj: (N, N). Returns (B, num_class, N)."""
    B, c_in, N = x.shape
    assert c_in == 1
    C1 = params["w1"].shape[0]
    C2 = params["w2"].shape[0]
    C3 = params["w3"].shape[0]
    nc = params["wc"].shape[0]
    R = B * max(c_in, C1, C2, C3, nc)          # row budget of the parameter slab

    eye_b = jnp.eye(B, dtype=jnp.float32)

    def kron_w(w):    # Conv1d weight (Cout, Cin, 1) -> block-diag (B*Cout, B*Cin)
        return jnp.kron(eye_b, w[:, :, 0].astype(jnp.float32))

    def tile_col(v):  # per-channel (C,) -> per-row column (B*C, 1), row = b*C + c
        return jnp.tile(v.astype(jnp.float32), (B,)).reshape(-1, 1)

    def pool_mat(C):  # (B*C, B*C): averages rows of equal channel across batches
        return jnp.kron(jnp.ones((B, B), jnp.float32) / B,
                        jnp.eye(C, dtype=jnp.float32))

    blocks = {
        "kw1": kron_w(params["w1"]), "b1": tile_col(params["b1"]),
        "g1": tile_col(params["g1"]), "be1": tile_col(params["be1"]), "p1": pool_mat(C1),
        "kw2": kron_w(params["w2"]), "b2": tile_col(params["b2"]),
        "g2": tile_col(params["g2"]), "be2": tile_col(params["be2"]), "p2": pool_mat(C2),
        "kw3": kron_w(params["w3"]), "b3": tile_col(params["b3"]),
        "g3": tile_col(params["g3"]), "be3": tile_col(params["be3"]), "p3": pool_mat(C3),
        "kwc": kron_w(params["wc"]), "bc": tile_col(params["bc"]),
    }

    # Pack every small parameter into a single (R, total_cols) f32 slab (one DMA).
    slots, cols, off = {}, [], 0
    for name, blk_arr in blocks.items():
        r, c = blk_arr.shape
        slots[name] = (off, r, c)
        cols.append(jnp.pad(blk_arr, ((0, R - r), (0, 0))))
        off += c
    slab = jnp.concatenate(cols, axis=1)

    x2 = x.reshape(B * c_in, N).astype(jnp.float32)   # rows = b*Cin + c, lanes = nodes
    adj_b = adj.astype(jnp.bfloat16)                  # shared (N, N) graph operator

    def kernel(x_ref, adj_ref, slab_ref, out_ref):
        def blk(name):
            o, r, c = slots[name]
            return slab_ref[:r, o:o + c]

        adj_v = adj_ref[...]                          # (N, N) bf16

        def graph(h):
            # nodes on lanes: one lane-dense bf16 MXU matmul shared by all batches
            return jnp.dot(h.astype(jnp.bfloat16), adj_v,
                           preferred_element_type=jnp.float32)

        def conv(h, wname, bname):
            # pointwise Conv1d == block-diag kron(I_B, W) @ h + bias (f32 accumulate)
            return (jnp.dot(blk(wname), h, preferred_element_type=jnp.float32)
                    + blk(bname))

        def bn_tanh(h, pname, gname, bename):
            # train-mode BatchNorm1d: per-channel stats over (batch, nodes), in f32
            pool = blk(pname)                         # (rows, rows) channel-pooling
            mu = jnp.mean(jnp.dot(pool, h, preferred_element_type=jnp.float32),
                          axis=1, keepdims=True)      # (rows, 1) per-channel mean
            d = h - mu
            var = jnp.mean(jnp.dot(pool, d * d, preferred_element_type=jnp.float32),
                           axis=1, keepdims=True)     # biased variance
            return jnp.tanh(blk(gname) * d * jax.lax.rsqrt(var + EPS) + blk(bename))

        h = graph(x_ref[...])                                        # (B*1,  N)
        h = bn_tanh(conv(h, "kw1", "b1"), "p1", "g1", "be1")         # (B*C1, N)
        h = graph(h)
        h = bn_tanh(conv(h, "kw2", "b2"), "p2", "g2", "be2")         # (B*C2, N)
        h = graph(h)
        h = bn_tanh(conv(h, "kw3", "b3"), "p3", "g3", "be3")         # (B*C3, N)
        logits = conv(h, "kwc", "bc")                                # (B*nc, N)

        # log_softmax over the class axis (nc contiguous rows per batch), in f32
        for b in range(B):                                           # B static & small
            lb = logits[b * nc:(b + 1) * nc, :]
            m = jnp.max(lb, axis=0, keepdims=True)
            z = lb - m
            lse = jnp.log(jnp.sum(jnp.exp(z), axis=0, keepdims=True))
            out_ref[b * nc:(b + 1) * nc, :] = z - lse

    vmem = pl.BlockSpec(memory_space=pltpu.MemorySpace.VMEM)
    out2 = pl.pallas_call(
        kernel,
        out_shape=jax.ShapeDtypeStruct((B * nc, N), jnp.float32),
        in_specs=[vmem, vmem, vmem],
        out_specs=vmem,
        compiler_params=pltpu.CompilerParams(vmem_limit_bytes=32 * 1024 * 1024),
    )(x2, adj_b, slab)

    # (B*num_class, N) is already the PyTorch channel-major layout: plain reshape.
    return out2.reshape(B, nc, N)


def reference_forward(x, adj, params):
    """Pure-JAX reference with identical semantics (for validation)."""
    def conv(h, w, b):
        return jnp.einsum('oc,bcn->bon', w[:, :, 0], h) + b[None, :, None]

    def bn(h, g, be):
        mu = jnp.mean(h, axis=(0, 2), keepdims=True)
        var = jnp.mean((h - mu) ** 2, axis=(0, 2), keepdims=True)
        return g[None, :, None] * (h - mu) / jnp.sqrt(var + EPS) + be[None, :, None]

    h = jnp.einsum('bcn,nm->bcm', x, adj)
    h = jnp.tanh(bn(conv(h, params['w1'], params['b1']), params['g1'], params['be1']))
    h = jnp.einsum('bcn,nm->bcm', h, adj)
    h = jnp.tanh(bn(conv(h, params['w2'], params['b2']), params['g2'], params['be2']))
    h = jnp.einsum('bcn,nm->bcm', h, adj)
    h = jnp.tanh(bn(conv(h, params['w3'], params['b3']), params['g3'], params['be3']))
    logits = conv(h, params['wc'], params['bc'])
    return jax.nn.log_softmax(logits, axis=1)


if __name__ == "__main__":
    key = jax.random.PRNGKey(0)
    B, N, num_class = 2, 16, 5
    ks = jax.random.split(key, 10)

    # deterministic inputs / parameters
    a = jax.random.uniform(ks[0], (N, N), jnp.float32)
    adj = a / jnp.sum(a, axis=1, keepdims=True)           # row-normalized adjacency
    x = jax.random.normal(ks[1], (B, 1, N), jnp.float32)  # (batch, 1, num_nodes)

    def conv_w(k, o, i):
        return 0.5 * jax.random.normal(k, (o, i, 1), jnp.float32)

    params = dict(
        w1=conv_w(ks[2], 4, 1), b1=0.1 * jax.random.normal(ks[3], (4,), jnp.float32),
        g1=jnp.ones((4,), jnp.float32), be1=jnp.zeros((4,), jnp.float32),
        w2=conv_w(ks[4], 8, 4), b2=0.1 * jax.random.normal(ks[5], (8,), jnp.float32),
        g2=jnp.ones((8,), jnp.float32), be2=jnp.zeros((8,), jnp.float32),
        w3=conv_w(ks[6], 8, 8), b3=0.1 * jax.random.normal(ks[7], (8,), jnp.float32),
        g3=jnp.ones((8,), jnp.float32), be3=jnp.zeros((8,), jnp.float32),
        wc=conv_w(ks[8], num_class, 8),
        bc=0.1 * jax.random.normal(ks[9], (num_class,), jnp.float32),
    )

    out = jax.block_until_ready(simple_gcn_forward(x, adj, params))
    ref = reference_forward(x, adj, params)
    assert out.shape == (B, num_class, N)
    # loose tolerance: graph matmuls run in bf16 on the MXU (stats/softmax in f32)
    assert float(jnp.max(jnp.abs(out - ref))) < 5e-2
    print("KERNEL_OK")
</pallas_src>

<mosaic_0001>
module attributes {stable_mosaic.version = 11 : i64} {
  func.func @kernel(%arg0: memref<2x16xf32, #tpu.memory_space<vmem>>, %arg1: memref<16x16xbf16, #tpu.memory_space<vmem>>, %arg2: memref<16x92xf32, #tpu.memory_space<vmem>>, %arg3: memref<10x16xf32, #tpu.memory_space<vmem>>) attributes {dimension_semantics = [], scalar_prefetch = 0 : i64, scratch_operands = 0 : i64, tpu.core_type = #tpu.core_type<tc>} {
    %c0 = arith.constant 0 : index
    %c0_0 = arith.constant 0 : index
    %0 = vector.load %arg1[%c0, %c0_0] : memref<16x16xbf16, #tpu.memory_space<vmem>>, vector<16x16xbf16>
    %c0_1 = arith.constant 0 : index
    %c0_2 = arith.constant 0 : index
    %1 = vector.load %arg0[%c0_1, %c0_2] : memref<2x16xf32, #tpu.memory_space<vmem>>, vector<2x16xf32>
    %2 = arith.truncf %1 : vector<2x16xf32> to vector<2x16xbf16>
    %cst = arith.constant dense<0.000000e+00> : vector<2x16xf32>
    %3 = tpu.matmul %2, %0, %cst {dimension_numbers = #tpu.dot_dimension_numbers<[1], [0], [0], [1], [0, 0, 1, 1], [], []>} : vector<2x16xbf16>, vector<16x16xbf16>, vector<2x16xf32> -> vector<2x16xf32>
    %c0_3 = arith.constant 0 : index
    %c0_4 = arith.constant 0 : index
    %4 = vector.load %arg2[%c0_3, %c0_4] : memref<16x92xf32, #tpu.memory_space<vmem>>, vector<8x2xf32>
    %cst_5 = arith.constant dense<0.000000e+00> : vector<8x16xf32>
    %5 = tpu.matmul %4, %3, %cst_5 {dimension_numbers = #tpu.dot_dimension_numbers<[1], [0], [0], [1], [0, 0, 1, 1], [], []>} : vector<8x2xf32>, vector<2x16xf32>, vector<8x16xf32> -> vector<8x16xf32>
    %c0_6 = arith.constant 0 : index
    %c2 = arith.constant 2 : index
    %6 = vector.load %arg2[%c0_6, %c2] : memref<16x92xf32, #tpu.memory_space<vmem>>, vector<8x1xf32>
    %7 = vector.broadcast %6 : vector<8x1xf32> to vector<8x16xf32>
    %8 = arith.addf %5, %7 : vector<8x16xf32>
    %c0_7 = arith.constant 0 : index
    %c5 = arith.constant 5 : index
    %9 = vector.load %arg2[%c0_7, %c5] : memref<16x92xf32, #tpu.memory_space<vmem>>, vector<8x8xf32>
    %cst_8 = arith.constant dense<0.000000e+00> : vector<8x16xf32>
    %10 = tpu.matmul %9, %8, %cst_8 {dimension_numbers = #tpu.dot_dimension_numbers<[1], [0], [0], [1], [0, 0, 1, 1], [], []>} : vector<8x8xf32>, vector<8x16xf32>, vector<8x16xf32> -> vector<8x16xf32>
    %cst_9 = arith.constant dense<0.000000e+00> : vector<8xf32>
    %11 = vector.multi_reduction <add>, %10, %cst_9 [1] : vector<8x16xf32> to vector<8xf32>
    %12 = vector.shape_cast %11 : vector<8xf32> to vector<8x1xf32>
    %cst_10 = arith.constant 1.600000e+01 : f32
    %13 = vector.broadcast %cst_10 : f32 to vector<8x1xf32>
    %14 = arith.divf %12, %13 : vector<8x1xf32>
    %15 = vector.broadcast %14 : vector<8x1xf32> to vector<8x16xf32>
    %16 = arith.subf %8, %15 : vector<8x16xf32>
    %17 = arith.mulf %16, %16 : vector<8x16xf32>
    %cst_11 = arith.constant dense<0.000000e+00> : vector<8x16xf32>
    %18 = tpu.matmul %9, %17, %cst_11 {dimension_numbers = #tpu.dot_dimension_numbers<[1], [0], [0], [1], [0, 0, 1, 1], [], []>} : vector<8x8xf32>, vector<8x16xf32>, vector<8x16xf32> -> vector<8x16xf32>
    %cst_12 = arith.constant dense<0.000000e+00> : vector<8xf32>
    %19 = vector.multi_reduction <add>, %18, %cst_12 [1] : vector<8x16xf32> to vector<8xf32>
    %20 = vector.shape_cast %19 : vector<8xf32> to vector<8x1xf32>
    %cst_13 = arith.constant 1.600000e+01 : f32
    %21 = vector.broadcast %cst_13 : f32 to vector<8x1xf32>
    %22 = arith.divf %20, %21 : vector<8x1xf32>
    %c0_14 = arith.constant 0 : index
    %c3 = arith.constant 3 : index
    %23 = vector.load %arg2[%c0_14, %c3] : memref<16x92xf32, #tpu.memory_space<vmem>>, vector<8x1xf32>
    %24 = vector.broadcast %23 : vector<8x1xf32> to vector<8x16xf32>
    %25 = arith.mulf %24, %16 : vector<8x16xf32>
    %cst_15 = arith.constant 9.99999974E-6 : f32
    %26 = vector.broadcast %cst_15 : f32 to vector<8x1xf32>
    %27 = arith.addf %22, %26 : vector<8x1xf32>
    %28 = math.rsqrt %27 : vector<8x1xf32>
    %29 = vector.broadcast %28 : vector<8x1xf32> to vector<8x16xf32>
    %30 = arith.mulf %25, %29 : vector<8x16xf32>
    %c0_16 = arith.constant 0 : index
    %c4 = arith.constant 4 : index
    %31 = vector.load %arg2[%c0_16, %c4] : memref<16x92xf32, #tpu.memory_space<vmem>>, vector<8x1xf32>
    %32 = vector.broadcast %31 : vector<8x1xf32> to vector<8x16xf32>
    %33 = arith.addf %30, %32 : vector<8x16xf32>
    %34 = math.tanh %33 : vector<8x16xf32>
    %35 = arith.truncf %34 : vector<8x16xf32> to vector<8x16xbf16>
    %cst_17 = arith.constant dense<0.000000e+00> : vector<8x16xf32>
    %36 = tpu.matmul %35, %0, %cst_17 {dimension_numbers = #tpu.dot_dimension_numbers<[1], [0], [0], [1], [0, 0, 1, 1], [], []>} : vector<8x16xbf16>, vector<16x16xbf16>, vector<8x16xf32> -> vector<8x16xf32>
    %c0_18 = arith.constant 0 : index
    %c13 = arith.constant 13 : index
    %37 = vector.load %arg2[%c0_18, %c13] : memref<16x92xf32, #tpu.memory_space<vmem>>, vector<16x8xf32>
    %cst_19 = arith.constant dense<0.000000e+00> : vector<16x16xf32>
    %38 = tpu.matmul %37, %36, %cst_19 {dimension_numbers = #tpu.dot_dimension_numbers<[1], [0], [0], [1], [0, 0, 1, 1], [], []>} : vector<16x8xf32>, vector<8x16xf32>, vector<16x16xf32> -> vector<16x16xf32>
    %c0_20 = arith.constant 0 : index
    %c21 = arith.constant 21 : index
    %39 = vector.load %arg2[%c0_20, %c21] : memref<16x92xf32, #tpu.memory_space<vmem>>, vector<16x1xf32>
    %40 = vector.broadcast %39 : vector<16x1xf32> to vector<16x16xf32>
    %41 = arith.addf %38, %40 : vector<16x16xf32>
    %c0_21 = arith.constant 0 : index
    %c24 = arith.constant 24 : index
    %42 = vector.load %arg2[%c0_21, %c24] : memref<16x92xf32, #tpu.memory_space<vmem>>, vector<16x16xf32>
    %cst_22 = arith.constant dense<0.000000e+00> : vector<16x16xf32>
    %43 = tpu.matmul %42, %41, %cst_22 {dimension_numbers = #tpu.dot_dimension_numbers<[1], [0], [0], [1], [0, 0, 1, 1], [], []>} : vector<16x16xf32>, vector<16x16xf32>, vector<16x16xf32> -> vector<16x16xf32>
    %cst_23 = arith.constant dense<0.000000e+00> : vector<16xf32>
    %44 = vector.multi_reduction <add>, %43, %cst_23 [1] : vector<16x16xf32> to vector<16xf32>
    %45 = vector.shape_cast %44 : vector<16xf32> to vector<16x1xf32>
    %cst_24 = arith.constant 1.600000e+01 : f32
    %46 = vector.broadcast %cst_24 : f32 to vector<16x1xf32>
    %47 = arith.divf %45, %46 : vector<16x1xf32>
    %48 = vector.broadcast %47 : vector<16x1xf32> to vector<16x16xf32>
    %49 = arith.subf %41, %48 : vector<16x16xf32>
    %50 = arith.mulf %49, %49 : vector<16x16xf32>
    %cst_25 = arith.constant dense<0.000000e+00> : vector<16x16xf32>
    %51 = tpu.matmul %42, %50, %cst_25 {dimension_numbers = #tpu.dot_dimension_numbers<[1], [0], [0], [1], [0, 0, 1, 1], [], []>} : vector<16x16xf32>, vector<16x16xf32>, vector<16x16xf32> -> vector<16x16xf32>
    %cst_26 = arith.constant dense<0.000000e+00> : vector<16xf32>
    %52 = vector.multi_reduction <add>, %51, %cst_26 [1] : vector<16x16xf32> to vector<16xf32>
    %53 = vector.shape_cast %52 : vector<16xf32> to vector<16x1xf32>
    %cst_27 = arith.constant 1.600000e+01 : f32
    %54 = vector.broadcast %cst_27 : f32 to vector<16x1xf32>
    %55 = arith.divf %53, %54 : vector<16x1xf32>
    %c0_28 = arith.constant 0 : index
    %c22 = arith.constant 22 : index
    %56 = vector.load %arg2[%c0_28, %c22] : memref<16x92xf32, #tpu.memory_space<vmem>>, vector<16x1xf32>
    %57 = vector.broadcast %56 : vector<16x1xf32> to vector<16x16xf32>
    %58 = arith.mulf %57, %49 : vector<16x16xf32>
    %cst_29 = arith.constant 9.99999974E-6 : f32
    %59 = vector.broadcast %cst_29 : f32 to vector<16x1xf32>
    %60 = arith.addf %55, %59 : vector<16x1xf32>
    %61 = math.rsqrt %60 : vector<16x1xf32>
    %62 = vector.broadcast %61 : vector<16x1xf32> to vector<16x16xf32>
    %63 = arith.mulf %58, %62 : vector<16x16xf32>
    %c0_30 = arith.constant 0 : index
    %c23 = arith.constant 23 : index
    %64 = vector.load %arg2[%c0_30, %c23] : memref<16x92xf32, #tpu.memory_space<vmem>>, vector<16x1xf32>
    %65 = vector.broadcast %64 : vector<16x1xf32> to vector<16x16xf32>
    %66 = arith.addf %63, %65 : vector<16x16xf32>
    %67 = math.tanh %66 : vector<16x16xf32>
    %68 = arith.truncf %67 : vector<16x16xf32> to vector<16x16xbf16>
    %cst_31 = arith.constant dense<0.000000e+00> : vector<16x16xf32>
    %69 = tpu.matmul %68, %0, %cst_31 {dimension_numbers = #tpu.dot_dimension_numbers<[1], [0], [0], [1], [0, 0, 1, 1], [], []>} : vector<16x16xbf16>, vector<16x16xbf16>, vector<16x16xf32> -> vector<16x16xf32>
    %c0_32 = arith.constant 0 : index
    %c40 = arith.constant 40 : index
    %70 = vector.load %arg2[%c0_32, %c40] : memref<16x92xf32, #tpu.memory_space<vmem>>, vector<16x16xf32>
    %cst_33 = arith.constant dense<0.000000e+00> : vector<16x16xf32>
    %71 = tpu.matmul %70, %69, %cst_33 {dimension_numbers = #tpu.dot_dimension_numbers<[1], [0], [0], [1], [0, 0, 1, 1], [], []>} : vector<16x16xf32>, vector<16x16xf32>, vector<16x16xf32> -> vector<16x16xf32>
    %c0_34 = arith.constant 0 : index
    %c56 = arith.constant 56 : index
    %72 = vector.load %arg2[%c0_34, %c56] : memref<16x92xf32, #tpu.memory_space<vmem>>, vector<16x1xf32>
    %73 = vector.broadcast %72 : vector<16x1xf32> to vector<16x16xf32>
    %74 = arith.addf %71, %73 : vector<16x16xf32>
    %c0_35 = arith.constant 0 : index
    %c59 = arith.constant 59 : index
    %75 = vector.load %arg2[%c0_35, %c59] : memref<16x92xf32, #tpu.memory_space<vmem>>, vector<16x16xf32>
    %cst_36 = arith.constant dense<0.000000e+00> : vector<16x16xf32>
    %76 = tpu.matmul %75, %74, %cst_36 {dimension_numbers = #tpu.dot_dimension_numbers<[1], [0], [0], [1], [0, 0, 1, 1], [], []>} : vector<16x16xf32>, vector<16x16xf32>, vector<16x16xf32> -> vector<16x16xf32>
    %cst_37 = arith.constant dense<0.000000e+00> : vector<16xf32>
    %77 = vector.multi_reduction <add>, %76, %cst_37 [1] : vector<16x16xf32> to vector<16xf32>
    %78 = vector.shape_cast %77 : vector<16xf32> to vector<16x1xf32>
    %cst_38 = arith.constant 1.600000e+01 : f32
    %79 = vector.broadcast %cst_38 : f32 to vector<16x1xf32>
    %80 = arith.divf %78, %79 : vector<16x1xf32>
    %81 = vector.broadcast %80 : vector<16x1xf32> to vector<16x16xf32>
    %82 = arith.subf %74, %81 : vector<16x16xf32>
    %83 = arith.mulf %82, %82 : vector<16x16xf32>
    %cst_39 = arith.constant dense<0.000000e+00> : vector<16x16xf32>
    %84 = tpu.matmul %75, %83, %cst_39 {dimension_numbers = #tpu.dot_dimension_numbers<[1], [0], [0], [1], [0, 0, 1, 1], [], []>} : vector<16x16xf32>, vector<16x16xf32>, vector<16x16xf32> -> vector<16x16xf32>
    %cst_40 = arith.constant dense<0.000000e+00> : vector<16xf32>
    %85 = vector.multi_reduction <add>, %84, %cst_40 [1] : vector<16x16xf32> to vector<16xf32>
    %86 = vector.shape_cast %85 : vector<16xf32> to vector<16x1xf32>
    %cst_41 = arith.constant 1.600000e+01 : f32
    %87 = vector.broadcast %cst_41 : f32 to vector<16x1xf32>
    %88 = arith.divf %86, %87 : vector<16x1xf32>
    %c0_42 = arith.constant 0 : index
    %c57 = arith.constant 57 : index
    %89 = vector.load %arg2[%c0_42, %c57] : memref<16x92xf32, #tpu.memory_space<vmem>>, vector<16x1xf32>
    %90 = vector.broadcast %89 : vector<16x1xf32> to vector<16x16xf32>
    %91 = arith.mulf %90, %82 : vector<16x16xf32>
    %cst_43 = arith.constant 9.99999974E-6 : f32
    %92 = vector.broadcast %cst_43 : f32 to vector<16x1xf32>
    %93 = arith.addf %88, %92 : vector<16x1xf32>
    %94 = math.rsqrt %93 : vector<16x1xf32>
    %95 = vector.broadcast %94 : vector<16x1xf32> to vector<16x16xf32>
    %96 = arith.mulf %91, %95 : vector<16x16xf32>
    %c0_44 = arith.constant 0 : index
    %c58 = arith.constant 58 : index
    %97 = vector.load %arg2[%c0_44, %c58] : memref<16x92xf32, #tpu.memory_space<vmem>>, vector<16x1xf32>
    %98 = vector.broadcast %97 : vector<16x1xf32> to vector<16x16xf32>
    %99 = arith.addf %96, %98 : vector<16x16xf32>
    %100 = math.tanh %99 : vector<16x16xf32>
    %c0_45 = arith.constant 0 : index
    %c75 = arith.constant 75 : index
    %101 = vector.load %arg2[%c0_45, %c75] : memref<16x92xf32, #tpu.memory_space<vmem>>, vector<10x16xf32>
    %cst_46 = arith.constant dense<0.000000e+00> : vector<10x16xf32>
    %102 = tpu.matmul %101, %100, %cst_46 {dimension_numbers = #tpu.dot_dimension_numbers<[1], [0], [0], [1], [0, 0, 1, 1], [], []>} : vector<10x16xf32>, vector<16x16xf32>, vector<10x16xf32> -> vector<10x16xf32>
    %c0_47 = arith.constant 0 : index
    %c91 = arith.constant 91 : index
    %103 = vector.load %arg2[%c0_47, %c91] : memref<16x92xf32, #tpu.memory_space<vmem>>, vector<10x1xf32>
    %104 = vector.broadcast %103 : vector<10x1xf32> to vector<10x16xf32>
    %105 = arith.addf %102, %104 : vector<10x16xf32>
    %106 = vector.extract_strided_slice %105 {offsets = [0, 0], sizes = [5, 16], strides = [1, 1]} : vector<10x16xf32> to vector<5x16xf32>
    %cst_48 = arith.constant dense<0xFF800000> : vector<16xf32>
    %107 = vector.multi_reduction <maximumf>, %106, %cst_48 [0] : vector<5x16xf32> to vector<16xf32>
    %108 = vector.shape_cast %107 : vector<16xf32> to vector<1x16xf32>
    %109 = vector.broadcast %108 : vector<1x16xf32> to vector<5x16xf32>
    %110 = arith.subf %106, %109 : vector<5x16xf32>
    %111 = math.exp %110 : vector<5x16xf32>
    %cst_49 = arith.constant dense<0.000000e+00> : vector<16xf32>
    %112 = vector.multi_reduction <add>, %111, %cst_49 [0] : vector<5x16xf32> to vector<16xf32>
    %113 = vector.shape_cast %112 : vector<16xf32> to vector<1x16xf32>
    %114 = math.log %113 : vector<1x16xf32>
    %115 = vector.broadcast %114 : vector<1x16xf32> to vector<5x16xf32>
    %116 = arith.subf %110, %115 : vector<5x16xf32>
    %c0_50 = arith.constant 0 : index
    %c0_51 = arith.constant 0 : index
    %117 = vector.load %arg3[%c0_50, %c0_51] : memref<10x16xf32, #tpu.memory_space<vmem>>, vector<5x16xf32>
    tpu.vector_store %arg3[%c0_50, %c0_51], %116 {strides = array<i32>} : memref<10x16xf32, #tpu.memory_space<vmem>>, vector<5x16xf32>,
    %118 = vector.extract_strided_slice %105 {offsets = [5, 0], sizes = [5, 16], strides = [1, 1]} : vector<10x16xf32> to vector<5x16xf32>
    %cst_52 = arith.constant dense<0xFF800000> : vector<16xf32>
    %119 = vector.multi_reduction <maximumf>, %118, %cst_52 [0] : vector<5x16xf32> to vector<16xf32>
    %120 = vector.shape_cast %119 : vector<16xf32> to vector<1x16xf32>
    %121 = vector.broadcast %120 : vector<1x16xf32> to vector<5x16xf32>
    %122 = arith.subf %118, %121 : vector<5x16xf32>
    %123 = math.exp %122 : vector<5x16xf32>
    %cst_53 = arith.constant dense<0.000000e+00> : vector<16xf32>
    %124 = vector.multi_reduction <add>, %123, %cst_53 [0] : vector<5x16xf32> to vector<16xf32>
    %125 = vector.shape_cast %124 : vector<16xf32> to vector<1x16xf32>
    %126 = math.log %125 : vector<1x16xf32>
    %127 = vector.broadcast %126 : vector<1x16xf32> to vector<5x16xf32>
    %128 = arith.subf %122, %127 : vector<5x16xf32>
    %c5_54 = arith.constant 5 : index
    %c0_55 = arith.constant 0 : index
    %129 = vector.load %arg3[%c5_54, %c0_55] : memref<10x16xf32, #tpu.memory_space<vmem>>, vector<5x16xf32>
    tpu.vector_store %arg3[%c5_54, %c0_55], %128 {strides = array<i32>} : memref<10x16xf32, #tpu.memory_space<vmem>>, vector<5x16xf32>,
    return
  }
}

</mosaic_0001>

<llo_original>
// kernel: tpu_custom_call.1
$region0: #{tpu_custom_call.1}
  #allocation0 [shape = 'u32[]', space=smem, size = 0x4, offset = 0x4, fixed_abs, tag = 'smem constant byte address 0x4 - core index']
  #allocation1 [shape = 'u32[144,128]{1,0:T(1,128)}', space=vmem, size = 0x12000, scoped, tag = 'internal scratch']
  %s0 = inlined_call_operand.hbm [shape: f32[2,16], index: 0, kind: input, shape index: {}]
  %s1 = inlined_call_operand.hbm [shape: bf16[16,16], index: 1, kind: input, shape index: {}]
  %s2 = inlined_call_operand.hbm [shape: f32[16,92], index: 2, kind: input, shape index: {}]
  %s3 = inlined_call_operand.hbm [shape: f32[10,16], index: 3, kind: output, shape index: {}]
  %s4 = sld [smem:[#allocation0]]
  $region34: #{tpu_custom_call.1} parent=0
    _
  %s6 = ssub.s32 1, %s4
  %s7 = scalar_select 0, %s6, %s4
  $region1: #{tpu_custom_call.1} parent=0
    #allocation2 [shape = 'u8[1024]{0}', space=vmem, size = 0x400, scoped, tag = 'input window, operand 0, single buffered']
    #allocation3 [shape = 's32[1]{0}', space=sflag, size = 0x4, scoped, tag = 'scoped memory for tpu_custom_call.1']
    #allocation4 [shape = 's32[1]{0}', space=sflag, size = 0x4, scoped, tag = 'scoped memory for tpu_custom_call.1']
    #allocation5 [shape = 'u8[4096]{0}', space=vmem, size = 0x1000, scoped, tag = 'input window, operand 1, single buffered']
    #allocation6 [shape = 's32[1]{0}', space=sflag, size = 0x4, scoped, tag = 'scoped memory for tpu_custom_call.1']
    #allocation7 [shape = 'u8[8192]{0}', space=vmem, size = 0x2000, scoped, tag = 'input window, operand 2, single buffered']
    #allocation8 [shape = 'u8[8192]{0}', space=vmem, size = 0x2000, scoped, tag = 'output window, operand 0, single buffered']
    %8 = vsyncpa [#allocation3], 0
    %9 = vsyncpa [#allocation6], 0
    %10 = vsyncpa [#allocation4], 0
    // Predicated region
    $region2: #{tpu_custom_call.1} parent=1 // pred_check
      _
    $region3: #{tpu_custom_call.1} parent=1 // pred_check_branch
      %12 = sbr.rel (0) target = $region5
    $region4: #{tpu_custom_call.1} parent=1 // pred_region
      %s14 = ssub.s32 32, 32
      %15 = vsyncadd [#allocation3], %s14
      %s17 = sshll.u32 [#allocation2], 4
      %s18 = int_to_ptr.vmem [resolvable:$true] %s17
      %20 = dma.hbm_to_vmem [thread:$0]  %s0, 32, %s18, [#allocation3]
    $region5: #{tpu_custom_call.1} parent=1 // pred_fallthru
      _
    // Predicated region
    $region6: #{tpu_custom_call.1} parent=1 // pred_check
      _
    $region7: #{tpu_custom_call.1} parent=1 // pred_check_branch
      %22 = sbr.rel (0) target = $region9
    $region8: #{tpu_custom_call.1} parent=1 // pred_region
      %s24 = ssub.s32 128, 128
      %25 = vsyncadd [#allocation6], %s24
      %s26 = sshll.u32 [#allocation5], 4
      %s27 = int_to_ptr.vmem [resolvable:$true] %s26
      %32 = dma.hbm_to_vmem [thread:$0]  %s1, 128, %s27, [#allocation6], 64, 64, 4
    $region9: #{tpu_custom_call.1} parent=1 // pred_fallthru
      _
    // Predicated region
    $region10: #{tpu_custom_call.1} parent=1 // pred_check
      _
    $region11: #{tpu_custom_call.1} parent=1 // pred_check_branch
      %34 = sbr.rel (0) target = $region13
    $region12: #{tpu_custom_call.1} parent=1 // pred_region
      %s36 = ssub.s32 256, 256
      %37 = vsyncadd [#allocation6], %s36
      %s38 = sshll.u32 [#allocation7], 4
      %s39 = int_to_ptr.vmem [resolvable:$true] %s38
      %44 = dma.hbm_to_vmem [thread:$0]  %s2, 256, %s39, [#allocation6], 128, 128, 8
    $region13: #{tpu_custom_call.1} parent=1 // pred_fallthru
      _
    // Predicated region
    $region14: #{tpu_custom_call.1} parent=1 // pred_check
      _
    $region15: #{tpu_custom_call.1} parent=1 // pred_check_branch
      %46 = sbr.rel (0) target = $region17
    $region16: #{tpu_custom_call.1} parent=1 // pred_region
      %47 = dma.done [#allocation3], 32
    $region17: #{tpu_custom_call.1} parent=1 // pred_fallthru
      _
    // Predicated region
    $region18: #{tpu_custom_call.1} parent=1 // pred_check
      _
    $region19: #{tpu_custom_call.1} parent=1 // pred_check_branch
      %49 = sbr.rel (0) target = $region21
    $region20: #{tpu_custom_call.1} parent=1 // pred_region
      %50 = dma.done [#allocation6], 128
    $region21: #{tpu_custom_call.1} parent=1 // pred_fallthru
      _
    // Predicated region
    $region22: #{tpu_custom_call.1} parent=1 // pred_check
      _
    $region23: #{tpu_custom_call.1} parent=1 // pred_check_branch
      %52 = sbr.rel (0) target = $region25
    $region24: #{tpu_custom_call.1} parent=1 // pred_region
      %53 = dma.done [#allocation6], 256
    $region25: #{tpu_custom_call.1} parent=1 // pred_fallthru
      _
    %v55 = vld [vmem:[#allocation5] sm:$0xf]
    %v56 = vld [vmem:[#allocation5 + $0x4] sm:$0xf]
    %v57 = vld [vmem:[#allocation2] sm:$0x3]
    %v58 = vpack.c.bf16 %v57, %v57
    %v61 = vunpack.c.l.b16 %v55
    %v62 = vunpack.c.l.b16 %v56
    %v63 = vpack.c.b16 %v62, %v61
    %vm65 = vcmask 130048
    %v67 = vsel %vm65, %v58, 0
    %69 = vmatprep.subr.bf16.mxu0 0
    %70 = vmatpush1.bf16.msra.mxu0 %v63
    %71 = vmatprep.subr.bf16.mxu0 0
    %72 = vmatpush1.bf16.msra.mxu0 0
    %73 = vmatprep.subr.bf16.mxu0 0
    %74 = vmatpush1.bf16.msra.mxu0 0
    %75 = vmatprep.subr.bf16.mxu0 0
    %76 = vmatpush1.bf16.msra.mxu0 0
    %77 = vmatprep.subr.bf16.mxu0 0
    %78 = vmatpush1.bf16.msra.mxu0 0
    %79 = vmatprep.subr.bf16.mxu0 0
    %80 = vmatpush1.bf16.msra.mxu0 0
    %81 = vmatprep.subr.bf16.mxu0 0
    %82 = vmatpush1.bf16.msra.mxu0 0
    %83 = vmatprep.subr.bf16.mxu0 0
    %84 = vmatpush1.bf16.msra.mxu0 0
    %85 = vmatprep.subr.bf16.mxu0 0
    %86 = vmatpush1.bf16.msra.mxu0 0
    %87 = vmatprep.subr.bf16.mxu0 0
    %88 = vmatpush1.bf16.msra.mxu0 0
    %89 = vmatprep.subr.bf16.mxu0 0
    %90 = vmatpush1.bf16.msra.mxu0 0
    %91 = vmatprep.subr.bf16.mxu0 0
    %92 = vmatpush1.bf16.msra.mxu0 0
    %93 = vmatprep.subr.bf16.mxu0 0
    %94 = vmatpush1.bf16.msra.mxu0 0
    %95 = vmatprep.subr.bf16.mxu0 0
    %96 = vmatpush1.bf16.msra.mxu0 0
    %97 = vmatprep.subr.bf16.mxu0 0
    %98 = vmatpush1.bf16.msra.mxu0 0
    %99 = vmatprep.subr.bf16.mxu0 0
    %100 = vmatpush1.bf16.msra.mxu0 0
    %101 = vmatprep.mubr.bf16.mxu0 0
    %102 = vmatmul.mubr.bf16.gmra.mrb[0].mxu0 %v67
    %v103 = vpop.f32.mrb[0].mxu0
    %v104 = vadd.f32 0.0, %v103
    %v105 = vpop.f32.mrb[0].mxu0
    %v106 = vpop.f32.mrb[0].mxu0
    %v107 = vpop.f32.mrb[0].mxu0
    %108 = vdwg.mxu0
    %v109 = vld [vmem:[#allocation7] sm:$0xff]
    %111 = vset.pattern.permute.xlu0 2
    %112 = vperm.xlu0 %111, %v109
    %v113 = vpop.permute.xlu0 %112
    %vm115 = vcmask 15360
    %v116 = vsel %vm115, %v109, 0
    %vm118 = vcmask 1041408
    %v120 = vsel %vm118, %v104, 0
    %122 = vmatprep.subr.mxu0 0.0
    %123 = vmatpush1.msra.mxu0 %v120
    %124 = vmatprep.subr.mxu0 0.0
    %125 = vmatpush1.msra.mxu0 0.0
    %126 = vmatprep.subr.mxu0 0.0
    %127 = vmatpush1.msra.mxu0 0.0
    %128 = vmatprep.subr.mxu0 0.0
    %129 = vmatpush1.msra.mxu0 0.0
    %130 = vmatprep.subr.mxu0 0.0
    %131 = vmatpush1.msra.mxu0 0.0
    %132 = vmatprep.subr.mxu0 0.0
    %133 = vmatpush1.msra.mxu0 0.0
    %134 = vmatprep.subr.mxu0 0.0
    %135 = vmatpush1.msra.mxu0 0.0
    %136 = vmatprep.subr.mxu0 0.0
    %137 = vmatpush1.msra.mxu0 0.0
    %138 = vmatprep.subr.mxu0 0.0
    %139 = vmatpush1.msra.mxu0 0.0
    %140 = vmatprep.subr.mxu0 0.0
    %141 = vmatpush1.msra.mxu0 0.0
    %142 = vmatprep.subr.mxu0 0.0
    %143 = vmatpush1.msra.mxu0 0.0
    %144 = vmatprep.subr.mxu0 0.0
    %145 = vmatpush1.msra.mxu0 0.0
    %146 = vmatprep.subr.mxu0 0.0
    %147 = vmatpush1.msra.mxu0 0.0
    %148 = vmatprep.subr.mxu0 0.0
    %149 = vmatpush1.msra.mxu0 0.0
    %150 = vmatprep.subr.mxu0 0.0
    %151 = vmatpush1.msra.mxu0 0.0
    %152 = vmatprep.subr.mxu0 0.0
    %153 = vmatpush1.msra.mxu0 0.0
    %154 = vmatprep.subr.mxu0 0.0
    %155 = vmatpush1.msra.mxu0 0.0
    %156 = vmatprep.subr.mxu0 0.0
    %157 = vmatpush1.msra.mxu0 0.0
    %158 = vmatprep.subr.mxu0 0.0
    %159 = vmatpush1.msra.mxu0 0.0
    %160 = vmatprep.subr.mxu0 0.0
    %161 = vmatpush1.msra.mxu0 0.0
    %162 = vmatprep.subr.mxu0 0.0
    %163 = vmatpush1.msra.mxu0 0.0
    %164 = vmatprep.subr.mxu0 0.0
    %165 = vmatpush1.msra.mxu0 0.0
    %166 = vmatprep.subr.mxu0 0.0
    %167 = vmatpush1.msra.mxu0 0.0
    %168 = vmatprep.subr.mxu0 0.0
    %169 = vmatpush1.msra.mxu0 0.0
    %170 = vmatprep.subr.mxu0 0.0
    %171 = vmatpush1.msra.mxu0 0.0
    %172 = vmatprep.subr.mxu0 0.0
    %173 = vmatpush1.msra.mxu0 0.0
    %174 = vmatprep.subr.mxu0 0.0
    %175 = vmatpush1.msra.mxu0 0.0
    %176 = vmatprep.subr.mxu0 0.0
    %177 = vmatpush1.msra.mxu0 0.0
    %178 = vmatprep.subr.mxu0 0.0
    %179 = vmatpush1.msra.mxu0 0.0
    %180 = vmatprep.subr.mxu0 0.0
    %181 = vmatpush1.msra.mxu0 0.0
    %182 = vmatprep.subr.mxu0 0.0
    %183 = vmatpush1.msra.mxu0 0.0
    %184 = vmatprep.subr.mxu0 0.0
    %185 = vmatpush1.msra.mxu0 0.0
    %186 = vmatprep.mubr.f32.mxu0 0.0
    %187 = vmatmul.mubr.f32.gmra.mrb[0].mxu0 %v116
    %v188 = vpop.f32.mrb[0].mxu0
    %v189 = vadd.f32 %v113, %v188
    %v190 = vpop.f32.mrb[0].mxu0
    %191 = vdwg.mxu0
    %192 = vrot.lane.b32.xlu0 %v109, 123
    %v193 = vpop.permute.xlu0 %192
    %vm194 = vcmask 64512
    %v195 = vsel %vm194, %v193, 0
    %197 = vmatprep.subr.mxu0 0.0
    %198 = vmatpush1.msra.mxu0 %v189
    %199 = vmatprep.subr.mxu0 0.0
    %200 = vmatpush1.msra.mxu0 0.0
    %201 = vmatprep.subr.mxu0 0.0
    %202 = vmatpush1.msra.mxu0 0.0
    %203 = vmatprep.subr.mxu0 0.0
    %204 = vmatpush1.msra.mxu0 0.0
    %205 = vmatprep.subr.mxu0 0.0
    %206 = vmatpush1.msra.mxu0 0.0
    %207 = vmatprep.subr.mxu0 0.0
    %208 = vmatpush1.msra.mxu0 0.0
    %209 = vmatprep.subr.mxu0 0.0
    %210 = vmatpush1.msra.mxu0 0.0
    %211 = vmatprep.subr.mxu0 0.0
    %212 = vmatpush1.msra.mxu0 0.0
    %213 = vmatprep.subr.mxu0 0.0
    %214 = vmatpush1.msra.mxu0 0.0
    %215 = vmatprep.subr.mxu0 0.0
    %216 = vmatpush1.msra.mxu0 0.0
    %217 = vmatprep.subr.mxu0 0.0
    %218 = vmatpush1.msra.mxu0 0.0
    %219 = vmatprep.subr.mxu0 0.0
    %220 = vmatpush1.msra.mxu0 0.0
    %221 = vmatprep.subr.mxu0 0.0
    %222 = vmatpush1.msra.mxu0 0.0
    %223 = vmatprep.subr.mxu0 0.0
    %224 = vmatpush1.msra.mxu0 0.0
    %225 = vmatprep.subr.mxu0 0.0
    %226 = vmatpush1.msra.mxu0 0.0
    %227 = vmatprep.subr.mxu0 0.0
    %228 = vmatpush1.msra.mxu0 0.0
    %229 = vmatprep.subr.mxu0 0.0
    %230 = vmatpush1.msra.mxu0 0.0
    %231 = vmatprep.subr.mxu0 0.0
    %232 = vmatpush1.msra.mxu0 0.0
    %233 = vmatprep.subr.mxu0 0.0
    %234 = vmatpush1.msra.mxu0 0.0
    %235 = vmatprep.subr.mxu0 0.0
    %236 = vmatpush1.msra.mxu0 0.0
    %237 = vmatprep.subr.mxu0 0.0
    %238 = vmatpush1.msra.mxu0 0.0
    %239 = vmatprep.subr.mxu0 0.0
    %240 = vmatpush1.msra.mxu0 0.0
    %241 = vmatprep.subr.mxu0 0.0
    %242 = vmatpush1.msra.mxu0 0.0
    %243 = vmatprep.subr.mxu0 0.0
    %244 = vmatpush1.msra.mxu0 0.0
    %245 = vmatprep.subr.mxu0 0.0
    %246 = vmatpush1.msra.mxu0 0.0
    %247 = vmatprep.subr.mxu0 0.0
    %248 = vmatpush1.msra.mxu0 0.0
    %249 = vmatprep.subr.mxu0 0.0
    %250 = vmatpush1.msra.mxu0 0.0
    %251 = vmatprep.subr.mxu0 0.0
    %252 = vmatpush1.msra.mxu0 0.0
    %253 = vmatprep.subr.mxu0 0.0
    %254 = vmatpush1.msra.mxu0 0.0
    %255 = vmatprep.subr.mxu0 0.0
    %256 = vmatpush1.msra.mxu0 0.0
    %257 = vmatprep.subr.mxu0 0.0
    %258 = vmatpush1.msra.mxu0 0.0
    %259 = vmatprep.subr.mxu0 0.0
    %260 = vmatpush1.msra.mxu0 0.0
    %261 = vmatprep.mubr.f32.mxu0 0.0
    %262 = vmatmul.mubr.f32.gmra.mrb[0].mxu0 %v195
    %v263 = vpop.f32.mrb[0].mxu0
    %v264 = vadd.f32 0.0, %v263
    %v265 = vpop.f32.mrb[0].mxu0
    %266 = vdwg.mxu0
    %v267 = vsel %vm65, %v264, 0.0
    %268 = vadd.xlane.f32.xlu0 %v267
    %v269 = vpop.xlane.xlu0 %268
    %v270 = vrcp.pop 16.0
    %v271 = vmul.f32 %v269, %v270
    %v272 = vsub.f32 %v189, %v271
    %v273 = vmul.f32 %v272, %v272
    %274 = vmatprep.subr.mxu0 0.0
    %275 = vmatpush1.msra.mxu0 %v273
    %276 = vmatprep.subr.mxu0 0.0
    %277 = vmatpush1.msra.mxu0 0.0
    %278 = vmatprep.subr.mxu0 0.0
    %279 = vmatpush1.msra.mxu0 0.0
    %280 = vmatprep.subr.mxu0 0.0
    %281 = vmatpush1.msra.mxu0 0.0
    %282 = vmatprep.subr.mxu0 0.0
    %283 = vmatpush1.msra.mxu0 0.0
    %284 = vmatprep.subr.mxu0 0.0
    %285 = vmatpush1.msra.mxu0 0.0
    %286 = vmatprep.subr.mxu0 0.0
    %287 = vmatpush1.msra.mxu0 0.0
    %288 = vmatprep.subr.mxu0 0.0
    %289 = vmatpush1.msra.mxu0 0.0
    %290 = vmatprep.subr.mxu0 0.0
    %291 = vmatpush1.msra.mxu0 0.0
    %292 = vmatprep.subr.mxu0 0.0
    %293 = vmatpush1.msra.mxu0 0.0
    %294 = vmatprep.subr.mxu0 0.0
    %295 = vmatpush1.msra.mxu0 0.0
    %296 = vmatprep.subr.mxu0 0.0
    %297 = vmatpush1.msra.mxu0 0.0
    %298 = vmatprep.subr.mxu0 0.0
    %299 = vmatpush1.msra.mxu0 0.0
    %300 = vmatprep.subr.mxu0 0.0
    %301 = vmatpush1.msra.mxu0 0.0
    %302 = vmatprep.subr.mxu0 0.0
    %303 = vmatpush1.msra.mxu0 0.0
    %304 = vmatprep.subr.mxu0 0.0
    %305 = vmatpush1.msra.mxu0 0.0
    %306 = vmatprep.subr.mxu0 0.0
    %307 = vmatpush1.msra.mxu0 0.0
    %308 = vmatprep.subr.mxu0 0.0
    %309 = vmatpush1.msra.mxu0 0.0
    %310 = vmatprep.subr.mxu0 0.0
    %311 = vmatpush1.msra.mxu0 0.0
    %312 = vmatprep.subr.mxu0 0.0
    %313 = vmatpush1.msra.mxu0 0.0
    %314 = vmatprep.subr.mxu0 0.0
    %315 = vmatpush1.msra.mxu0 0.0
    %316 = vmatprep.subr.mxu0 0.0
    %317 = vmatpush1.msra.mxu0 0.0
    %318 = vmatprep.subr.mxu0 0.0
    %319 = vmatpush1.msra.mxu0 0.0
    %320 = vmatprep.subr.mxu0 0.0
    %321 = vmatpush1.msra.mxu0 0.0
    %322 = vmatprep.subr.mxu0 0.0
    %323 = vmatpush1.msra.mxu0 0.0
    %324 = vmatprep.subr.mxu0 0.0
    %325 = vmatpush1.msra.mxu0 0.0
    %326 = vmatprep.subr.mxu0 0.0
    %327 = vmatpush1.msra.mxu0 0.0
    %328 = vmatprep.subr.mxu0 0.0
    %329 = vmatpush1.msra.mxu0 0.0
    %330 = vmatprep.subr.mxu0 0.0
    %331 = vmatpush1.msra.mxu0 0.0
    %332 = vmatprep.subr.mxu0 0.0
    %333 = vmatpush1.msra.mxu0 0.0
    %334 = vmatprep.subr.mxu0 0.0
    %335 = vmatpush1.msra.mxu0 0.0
    %336 = vmatprep.subr.mxu0 0.0
    %337 = vmatpush1.msra.mxu0 0.0
    %338 = vmatprep.mubr.f32.mxu0 0.0
    %339 = vmatmul.mubr.f32.gmra.mrb[0].mxu0 %v195
    %v340 = vpop.f32.mrb[0].mxu0
    %v341 = vadd.f32 0.0, %v340
    %v342 = vpop.f32.mrb[0].mxu0
    %343 = vdwg.mxu0
    %v344 = vsel %vm65, %v341, 0.0
    %345 = vadd.xlane.f32.xlu0 %v344
    %v346 = vpop.xlane.xlu0 %345
    %v347 = vmul.f32 %v346, %v270
    %348 = vset.pattern.permute.xlu0 3
    %349 = vperm.xlu0 %348, %v109
    %v350 = vpop.permute.xlu0 %349
    %v352 = vmul.f32 %v350, %v272
    %v353 = vadd.f32 %v347, 1e-05
    %v354 = vrsqrt.pop %v353
    %v355 = vmul.f32 %v352, %v354
    %356 = vset.pattern.permute.xlu0 4
    %357 = vperm.xlu0 %356, %v109
    %v358 = vpop.permute.xlu0 %357
    %v360 = vadd.f32 %v355, %v358
    %v361 = vtanh.pop %v360
    %v362 = vpack.c.bf16 %v361, %v361
    %v364 = vsel %vm65, %v362, 0
    %366 = vmatprep.subr.bf16.mxu0 0
    %367 = vmatpush1.bf16.msra.mxu0 %v63
    %368 = vmatprep.subr.bf16.mxu0 0
    %369 = vmatpush1.bf16.msra.mxu0 0
    %370 = vmatprep.subr.bf16.mxu0 0
    %371 = vmatpush1.bf16.msra.mxu0 0
    %372 = vmatprep.subr.bf16.mxu0 0
    %373 = vmatpush1.bf16.msra.mxu0 0
    %374 = vmatprep.subr.bf16.mxu0 0
    %375 = vmatpush1.bf16.msra.mxu0 0
    %376 = vmatprep.subr.bf16.mxu0 0
    %377 = vmatpush1.bf16.msra.mxu0 0
    %378 = vmatprep.subr.bf16.mxu0 0
    %379 = vmatpush1.bf16.msra.mxu0 0
    %380 = vmatprep.subr.bf16.mxu0 0
    %381 = vmatpush1.bf16.msra.mxu0 0
    %382 = vmatprep.subr.bf16.mxu0 0
    %383 = vmatpush1.bf16.msra.mxu0 0
    %384 = vmatprep.subr.bf16.mxu0 0
    %385 = vmatpush1.bf16.msra.mxu0 0
    %386 = vmatprep.subr.bf16.mxu0 0
    %387 = vmatpush1.bf16.msra.mxu0 0
    %388 = vmatprep.subr.bf16.mxu0 0
    %389 = vmatpush1.bf16.msra.mxu0 0
    %390 = vmatprep.subr.bf16.mxu0 0
    %391 = vmatpush1.bf16.msra.mxu0 0
    %392 = vmatprep.subr.bf16.mxu0 0
    %393 = vmatpush1.bf16.msra.mxu0 0
    %394 = vmatprep.subr.bf16.mxu0 0
    %395 = vmatpush1.bf16.msra.mxu0 0
    %396 = vmatprep.subr.bf16.mxu0 0
    %397 = vmatpush1.bf16.msra.mxu0 0
    %398 = vmatprep.mubr.bf16.mxu0 0
    %399 = vmatmul.mubr.bf16.gmra.mrb[0].mxu0 %v364
    %v400 = vpop.f32.mrb[0].mxu0
    %v401 = vadd.f32 0.0, %v400
    %v402 = vpop.f32.mrb[0].mxu0
    %v403 = vpop.f32.mrb[0].mxu0
    %v404 = vpop.f32.mrb[0].mxu0
    %405 = vdwg.mxu0
    %v406 = vld [vmem:[#allocation7] sm:$0xff]
    %v407 = vld [vmem:[#allocation7 + $0x8] sm:$0xff]
    %409 = vset.pattern.permute.xlu0 21
    %410 = vperm.xlu0 %409, %v406
    %v411 = vpop.permute.xlu0 %410
    %414 = vset.pattern.permute.xlu0 21
    %415 = vperm.xlu0 %414, %v407
    %v416 = vpop.permute.xlu0 %415
    %418 = vrot.lane.b32.xlu0 %v406, 115
    %v419 = vpop.permute.xlu0 %418
    %420 = vrot.lane.b32.xlu0 %v407, 115
    %v421 = vpop.permute.xlu0 %420
    %v422 = vsel %vm194, %v419, 0
    %v424 = vsel %vm194, %v421, 0
    %426 = vmatprep.subr.mxu0 0.0
    %427 = vmatpush1.msra.mxu0 %v401
    %428 = vmatprep.subr.mxu0 0.0
    %429 = vmatpush1.msra.mxu0 0.0
    %430 = vmatprep.subr.mxu0 0.0
    %431 = vmatpush1.msra.mxu0 0.0
    %432 = vmatprep.subr.mxu0 0.0
    %433 = vmatpush1.msra.mxu0 0.0
    %434 = vmatprep.subr.mxu0 0.0
    %435 = vmatpush1.msra.mxu0 0.0
    %436 = vmatprep.subr.mxu0 0.0
    %437 = vmatpush1.msra.mxu0 0.0
    %438 = vmatprep.subr.mxu0 0.0
    %439 = vmatpush1.msra.mxu0 0.0
    %440 = vmatprep.subr.mxu0 0.0
    %441 = vmatpush1.msra.mxu0 0.0
    %442 = vmatprep.subr.mxu0 0.0
    %443 = vmatpush1.msra.mxu0 0.0
    %444 = vmatprep.subr.mxu0 0.0
    %445 = vmatpush1.msra.mxu0 0.0
    %446 = vmatprep.subr.mxu0 0.0
    %447 = vmatpush1.msra.mxu0 0.0
    %448 = vmatprep.subr.mxu0 0.0
    %449 = vmatpush1.msra.mxu0 0.0
    %450 = vmatprep.subr.mxu0 0.0
    %451 = vmatpush1.msra.mxu0 0.0
    %452 = vmatprep.subr.mxu0 0.0
    %453 = vmatpush1.msra.mxu0 0.0
    %454 = vmatprep.subr.mxu0 0.0
    %455 = vmatpush1.msra.mxu0 0.0
    %456 = vmatprep.subr.mxu0 0.0
    %457 = vmatpush1.msra.mxu0 0.0
    %458 = vmatprep.subr.mxu0 0.0
    %459 = vmatpush1.msra.mxu0 0.0
    %460 = vmatprep.subr.mxu0 0.0
    %461 = vmatpush1.msra.mxu0 0.0
    %462 = vmatprep.subr.mxu0 0.0
    %463 = vmatpush1.msra.mxu0 0.0
    %464 = vmatprep.subr.mxu0 0.0
    %465 = vmatpush1.msra.mxu0 0.0
    %466 = vmatprep.subr.mxu0 0.0
    %467 = vmatpush1.msra.mxu0 0.0
    %468 = vmatprep.subr.mxu0 0.0
    %469 = vmatpush1.msra.mxu0 0.0
    %470 = vmatprep.subr.mxu0 0.0
    %471 = vmatpush1.msra.mxu0 0.0
    %472 = vmatprep.subr.mxu0 0.0
    %473 = vmatpush1.msra.mxu0 0.0
    %474 = vmatprep.subr.mxu0 0.0
    %475 = vmatpush1.msra.mxu0 0.0
    %476 = vmatprep.subr.mxu0 0.0
    %477 = vmatpush1.msra.mxu0 0.0
    %478 = vmatprep.subr.mxu0 0.0
    %479 = vmatpush1.msra.mxu0 0.0
    %480 = vmatprep.subr.mxu0 0.0
    %481 = vmatpush1.msra.mxu0 0.0
    %482 = vmatprep.subr.mxu0 0.0
    %483 = vmatpush1.msra.mxu0 0.0
    %484 = vmatprep.subr.mxu0 0.0
    %485 = vmatpush1.msra.mxu0 0.0
    %486 = vmatprep.subr.mxu0 0.0
    %487 = vmatpush1.msra.mxu0 0.0
    %488 = vmatprep.subr.mxu0 0.0
    %489 = vmatpush1.msra.mxu0 0.0
    %490 = vmatprep.mubr.f32.mxu0 0.0
    %491 = vmatmul.mubr.f32.gmra.mrb[0].mxu0 %v422
    %v492 = vpop.f32.mrb[0].mxu0
    %v493 = vadd.f32 %v411, %v492
    %v494 = vpop.f32.mrb[0].mxu0
    %495 = vmatprep.mubr.f32.mxu0 0.0
    %496 = vmatmul.mubr.f32.gmra.mrb[0].mxu0 %v424
    %v497 = vpop.f32.mrb[0].mxu0
    %v498 = vadd.f32 %v416, %v497
    %v499 = vpop.f32.mrb[0].mxu0
    %500 = vdwg.mxu0
    %501 = vrot.lane.b32.xlu0 %v406, 104
    %v502 = vpop.permute.xlu0 %501
    %503 = vrot.lane.b32.xlu0 %v407, 104
    %v504 = vpop.permute.xlu0 %503
    %v505 = vsel %vm65, %v502, 0
    %v507 = vsel %vm65, %v504, 0
    %509 = vmatprep.subr.mxu0 0.0
    %510 = vmatpush1.msra.mxu0 %v493
    %511 = vmatprep.subr.mxu0 0.0
    %512 = vmatpush1.msra.mxu0 %v498
    %513 = vmatprep.subr.mxu0 0.0
    %514 = vmatpush1.msra.mxu0 0.0
    %515 = vmatprep.subr.mxu0 0.0
    %516 = vmatpush1.msra.mxu0 0.0
    %517 = vmatprep.subr.mxu0 0.0
    %518 = vmatpush1.msra.mxu0 0.0
    %519 = vmatprep.subr.mxu0 0.0
    %520 = vmatpush1.msra.mxu0 0.0
    %521 = vmatprep.subr.mxu0 0.0
    %522 = vmatpush1.msra.mxu0 0.0
    %523 = vmatprep.subr.mxu0 0.0
    %524 = vmatpush1.msra.mxu0 0.0
    %525 = vmatprep.subr.mxu0 0.0
    %526 = vmatpush1.msra.mxu0 0.0
    %527 = vmatprep.subr.mxu0 0.0
    %528 = vmatpush1.msra.mxu0 0.0
    %529 = vmatprep.subr.mxu0 0.0
    %530 = vmatpush1.msra.mxu0 0.0
    %531 = vmatprep.subr.mxu0 0.0
    %532 = vmatpush1.msra.mxu0 0.0
    %533 = vmatprep.subr.mxu0 0.0
    %534 = vmatpush1.msra.mxu0 0.0
    %535 = vmatprep.subr.mxu0 0.0
    %536 = vmatpush1.msra.mxu0 0.0
    %537 = vmatprep.subr.mxu0 0.0
    %538 = vmatpush1.msra.mxu0 0.0
    %539 = vmatprep.subr.mxu0 0.0
    %540 = vmatpush1.msra.mxu0 0.0
    %541 = vmatprep.subr.mxu0 0.0
    %542 = vmatpush1.msra.mxu0 0.0
    %543 = vmatprep.subr.mxu0 0.0
    %544 = vmatpush1.msra.mxu0 0.0
    %545 = vmatprep.subr.mxu0 0.0
    %546 = vmatpush1.msra.mxu0 0.0
    %547 = vmatprep.subr.mxu0 0.0
    %548 = vmatpush1.msra.mxu0 0.0
    %549 = vmatprep.subr.mxu0 0.0
    %550 = vmatpush1.msra.mxu0 0.0
    %551 = vmatprep.subr.mxu0 0.0
    %552 = vmatpush1.msra.mxu0 0.0
    %553 = vmatprep.subr.mxu0 0.0
    %554 = vmatpush1.msra.mxu0 0.0
    %555 = vmatprep.subr.mxu0 0.0
    %556 = vmatpush1.msra.mxu0 0.0
    %557 = vmatprep.subr.mxu0 0.0
    %558 = vmatpush1.msra.mxu0 0.0
    %559 = vmatprep.subr.mxu0 0.0
    %560 = vmatpush1.msra.mxu0 0.0
    %561 = vmatprep.subr.mxu0 0.0
    %562 = vmatpush1.msra.mxu0 0.0
    %563 = vmatprep.subr.mxu0 0.0
    %564 = vmatpush1.msra.mxu0 0.0
    %565 = vmatprep.subr.mxu0 0.0
    %566 = vmatpush1.msra.mxu0 0.0
    %567 = vmatprep.subr.mxu0 0.0
    %568 = vmatpush1.msra.mxu0 0.0
    %569 = vmatprep.subr.mxu0 0.0
    %570 = vmatpush1.msra.mxu0 0.0
    %571 = vmatprep.subr.mxu0 0.0
    %572 = vmatpush1.msra.mxu0 0.0
    %573 = vmatprep.mubr.f32.mxu0 0.0
    %574 = vmatmul.mubr.f32.gmra.mrb[0].mxu0 %v505
    %v575 = vpop.f32.mrb[0].mxu0
    %v576 = vadd.f32 0.0, %v575
    %v577 = vpop.f32.mrb[0].mxu0
    %578 = vmatprep.mubr.f32.mxu0 0.0
    %579 = vmatmul.mubr.f32.gmra.mrb[0].mxu0 %v507
    %v580 = vpop.f32.mrb[0].mxu0
    %v581 = vadd.f32 0.0, %v580
    %v582 = vpop.f32.mrb[0].mxu0
    %583 = vdwg.mxu0
    %v584 = vsel %vm65, %v576, 0.0
    %585 = vadd.xlane.f32.xlu0 %v584
    %v586 = vpop.xlane.xlu0 %585
    %v587 = vsel %vm65, %v581, 0.0
    %588 = vadd.xlane.f32.xlu0 %v587
    %v589 = vpop.xlane.xlu0 %588
    %v590 = vmul.f32 %v586, %v270
    %v591 = vmul.f32 %v589, %v270
    %v592 = vsub.f32 %v493, %v590
    %v593 = vsub.f32 %v498, %v591
    %v594 = vmul.f32 %v592, %v592
    %v595 = vmul.f32 %v593, %v593
    %596 = vmatprep.subr.mxu0 0.0
    %597 = vmatpush1.msra.mxu0 %v594
    %598 = vmatprep.subr.mxu0 0.0
    %599 = vmatpush1.msra.mxu0 %v595
    %600 = vmatprep.subr.mxu0 0.0
    %601 = vmatpush1.msra.mxu0 0.0
    %602 = vmatprep.subr.mxu0 0.0
    %603 = vmatpush1.msra.mxu0 0.0
    %604 = vmatprep.subr.mxu0 0.0
    %605 = vmatpush1.msra.mxu0 0.0
    %606 = vmatprep.subr.mxu0 0.0
    %607 = vmatpush1.msra.mxu0 0.0
    %608 = vmatprep.subr.mxu0 0.0
    %609 = vmatpush1.msra.mxu0 0.0
    %610 = vmatprep.subr.mxu0 0.0
    %611 = vmatpush1.msra.mxu0 0.0
    %612 = vmatprep.subr.mxu0 0.0
    %613 = vmatpush1.msra.mxu0 0.0
    %614 = vmatprep.subr.mxu0 0.0
    %615 = vmatpush1.msra.mxu0 0.0
    %616 = vmatprep.subr.mxu0 0.0
    %617 = vmatpush1.msra.mxu0 0.0
    %618 = vmatprep.subr.mxu0 0.0
    %619 = vmatpush1.msra.mxu0 0.0
    %620 = vmatprep.subr.mxu0 0.0
    %621 = vmatpush1.msra.mxu0 0.0
    %622 = vmatprep.subr.mxu0 0.0
    %623 = vmatpush1.msra.mxu0 0.0
    %624 = vmatprep.subr.mxu0 0.0
    %625 = vmatpush1.msra.mxu0 0.0
    %626 = vmatprep.subr.mxu0 0.0
    %627 = vmatpush1.msra.mxu0 0.0
    %628 = vmatprep.subr.mxu0 0.0
    %629 = vmatpush1.msra.mxu0 0.0
    %630 = vmatprep.subr.mxu0 0.0
    %631 = vmatpush1.msra.mxu0 0.0
    %632 = vmatprep.subr.mxu0 0.0
    %633 = vmatpush1.msra.mxu0 0.0
    %634 = vmatprep.subr.mxu0 0.0
    %635 = vmatpush1.msra.mxu0 0.0
    %636 = vmatprep.subr.mxu0 0.0
    %637 = vmatpush1.msra.mxu0 0.0
    %638 = vmatprep.subr.mxu0 0.0
    %639 = vmatpush1.msra.mxu0 0.0
    %640 = vmatprep.subr.mxu0 0.0
    %641 = vmatpush1.msra.mxu0 0.0
    %642 = vmatprep.subr.mxu0 0.0
    %643 = vmatpush1.msra.mxu0 0.0
    %644 = vmatprep.subr.mxu0 0.0
    %645 = vmatpush1.msra.mxu0 0.0
    %646 = vmatprep.subr.mxu0 0.0
    %647 = vmatpush1.msra.mxu0 0.0
    %648 = vmatprep.subr.mxu0 0.0
    %649 = vmatpush1.msra.mxu0 0.0
    %650 = vmatprep.subr.mxu0 0.0
    %651 = vmatpush1.msra.mxu0 0.0
    %652 = vmatprep.subr.mxu0 0.0
    %653 = vmatpush1.msra.mxu0 0.0
    %654 = vmatprep.subr.mxu0 0.0
    %655 = vmatpush1.msra.mxu0 0.0
    %656 = vmatprep.subr.mxu0 0.0
    %657 = vmatpush1.msra.mxu0 0.0
    %658 = vmatprep.subr.mxu0 0.0
    %659 = vmatpush1.msra.mxu0 0.0
    %660 = vmatprep.mubr.f32.mxu0 0.0
    %661 = vmatmul.mubr.f32.gmra.mrb[0].mxu0 %v505
    %v662 = vpop.f32.mrb[0].mxu0
    %v663 = vadd.f32 0.0, %v662
    %v664 = vpop.f32.mrb[0].mxu0
    %665 = vmatprep.mubr.f32.mxu0 0.0
    %666 = vmatmul.mubr.f32.gmra.mrb[0].mxu0 %v507
    %v667 = vpop.f32.mrb[0].mxu0
    %v668 = vadd.f32 0.0, %v667
    %v669 = vpop.f32.mrb[0].mxu0
    %670 = vdwg.mxu0
    %v671 = vsel %vm65, %v663, 0.0
    %672 = vadd.xlane.f32.xlu0 %v671
    %v673 = vpop.xlane.xlu0 %672
    %v674 = vsel %vm65, %v668, 0.0
    %675 = vadd.xlane.f32.xlu0 %v674
    %v676 = vpop.xlane.xlu0 %675
    %v677 = vmul.f32 %v673, %v270
    %v678 = vmul.f32 %v676, %v270
    %679 = vset.pattern.permute.xlu0 22
    %680 = vperm.xlu0 %679, %v406
    %v681 = vpop.permute.xlu0 %680
    %683 = vset.pattern.permute.xlu0 22
    %684 = vperm.xlu0 %683, %v407
    %v685 = vpop.permute.xlu0 %684
    %v687 = vmul.f32 %v681, %v592
    %v688 = vmul.f32 %v685, %v593
    %v689 = vadd.f32 %v677, 1e-05
    %v690 = vadd.f32 %v678, 1e-05
    %v691 = vrsqrt.pop %v689
    %v692 = vrsqrt.pop %v690
    %v693 = vmul.f32 %v687, %v691
    %v694 = vmul.f32 %v688, %v692
    %695 = vset.pattern.permute.xlu0 23
    %696 = vperm.xlu0 %695, %v406
    %v697 = vpop.permute.xlu0 %696
    %699 = vset.pattern.permute.xlu0 23
    %700 = vperm.xlu0 %699, %v407
    %v701 = vpop.permute.xlu0 %700
    %v703 = vadd.f32 %v693, %v697
    %v704 = vadd.f32 %v694, %v701
    %v705 = vtanh.pop %v703
    %v706 = vtanh.pop %v704
    %v707 = vpack.c.bf16 %v706, %v705
    %v709 = vsel %vm65, %v707, 0
    %711 = vmatprep.subr.bf16.mxu0 0
    %712 = vmatpush1.bf16.msra.mxu0 %v63
    %713 = vmatprep.subr.bf16.mxu0 0
    %714 = vmatpush1.bf16.msra.mxu0 0
    %715 = vmatprep.subr.bf16.mxu0 0
    %716 = vmatpush1.bf16.msra.mxu0 0
    %717 = vmatprep.subr.bf16.mxu0 0
    %718 = vmatpush1.bf16.msra.mxu0 0
    %719 = vmatprep.subr.bf16.mxu0 0
    %720 = vmatpush1.bf16.msra.mxu0 0
    %721 = vmatprep.subr.bf16.mxu0 0
    %722 = vmatpush1.bf16.msra.mxu0 0
    %723 = vmatprep.subr.bf16.mxu0 0
    %724 = vmatpush1.bf16.msra.mxu0 0
    %725 = vmatprep.subr.bf16.mxu0 0
    %726 = vmatpush1.bf16.msra.mxu0 0
    %727 = vmatprep.subr.bf16.mxu0 0
    %728 = vmatpush1.bf16.msra.mxu0 0
    %729 = vmatprep.subr.bf16.mxu0 0
    %730 = vmatpush1.bf16.msra.mxu0 0
    %731 = vmatprep.subr.bf16.mxu0 0
    %732 = vmatpush1.bf16.msra.mxu0 0
    %733 = vmatprep.subr.bf16.mxu0 0
    %734 = vmatpush1.bf16.msra.mxu0 0
    %735 = vmatprep.subr.bf16.mxu0 0
    %736 = vmatpush1.bf16.msra.mxu0 0
    %737 = vmatprep.subr.bf16.mxu0 0
    %738 = vmatpush1.bf16.msra.mxu0 0
    %739 = vmatprep.subr.bf16.mxu0 0
    %740 = vmatpush1.bf16.msra.mxu0 0
    %741 = vmatprep.subr.bf16.mxu0 0
    %742 = vmatpush1.bf16.msra.mxu0 0
    %743 = vmatprep.mubr.bf16.mxu0 0
    %744 = vmatmul.mubr.bf16.gmra.mrb[0].mxu0 %v709
    %v745 = vpop.f32.mrb[0].mxu0
    %v746 = vadd.f32 0.0, %v745
    %v747 = vpop.f32.mrb[0].mxu0
    %v748 = vpop.f32.mrb[0].mxu0
    %v749 = vadd.f32 0.0, %v748
    %v750 = vpop.f32.mrb[0].mxu0
    %751 = vdwg.mxu0
    %752 = vset.pattern.permute.xlu0 56
    %753 = vperm.xlu0 %752, %v406
    %v754 = vpop.permute.xlu0 %753
    %756 = vset.pattern.permute.xlu0 56
    %757 = vperm.xlu0 %756, %v407
    %v758 = vpop.permute.xlu0 %757
    %760 = vrot.lane.b32.xlu0 %v406, 88
    %v761 = vpop.permute.xlu0 %760
    %762 = vrot.lane.b32.xlu0 %v407, 88
    %v763 = vpop.permute.xlu0 %762
    %v764 = vsel %vm65, %v761, 0
    %v766 = vsel %vm65, %v763, 0
    %768 = vmatprep.subr.mxu0 0.0
    %769 = vmatpush1.msra.mxu0 %v746
    %770 = vmatprep.subr.mxu0 0.0
    %771 = vmatpush1.msra.mxu0 %v749
    %772 = vmatprep.subr.mxu0 0.0
    %773 = vmatpush1.msra.mxu0 0.0
    %774 = vmatprep.subr.mxu0 0.0
    %775 = vmatpush1.msra.mxu0 0.0
    %776 = vmatprep.subr.mxu0 0.0
    %777 = vmatpush1.msra.mxu0 0.0
    %778 = vmatprep.subr.mxu0 0.0
    %779 = vmatpush1.msra.mxu0 0.0
    %780 = vmatprep.subr.mxu0 0.0
    %781 = vmatpush1.msra.mxu0 0.0
    %782 = vmatprep.subr.mxu0 0.0
    %783 = vmatpush1.msra.mxu0 0.0
    %784 = vmatprep.subr.mxu0 0.0
    %785 = vmatpush1.msra.mxu0 0.0
    %786 = vmatprep.subr.mxu0 0.0
    %787 = vmatpush1.msra.mxu0 0.0
    %788 = vmatprep.subr.mxu0 0.0
    %789 = vmatpush1.msra.mxu0 0.0
    %790 = vmatprep.subr.mxu0 0.0
    %791 = vmatpush1.msra.mxu0 0.0
    %792 = vmatprep.subr.mxu0 0.0
    %793 = vmatpush1.msra.mxu0 0.0
    %794 = vmatprep.subr.mxu0 0.0
    %795 = vmatpush1.msra.mxu0 0.0
    %796 = vmatprep.subr.mxu0 0.0
    %797 = vmatpush1.msra.mxu0 0.0
    %798 = vmatprep.subr.mxu0 0.0
    %799 = vmatpush1.msra.mxu0 0.0
    %800 = vmatprep.subr.mxu0 0.0
    %801 = vmatpush1.msra.mxu0 0.0
    %802 = vmatprep.subr.mxu0 0.0
    %803 = vmatpush1.msra.mxu0 0.0
    %804 = vmatprep.subr.mxu0 0.0
    %805 = vmatpush1.msra.mxu0 0.0
    %806 = vmatprep.subr.mxu0 0.0
    %807 = vmatpush1.msra.mxu0 0.0
    %808 = vmatprep.subr.mxu0 0.0
    %809 = vmatpush1.msra.mxu0 0.0
    %810 = vmatprep.subr.mxu0 0.0
    %811 = vmatpush1.msra.mxu0 0.0
    %812 = vmatprep.subr.mxu0 0.0
    %813 = vmatpush1.msra.mxu0 0.0
    %814 = vmatprep.subr.mxu0 0.0
    %815 = vmatpush1.msra.mxu0 0.0
    %816 = vmatprep.subr.mxu0 0.0
    %817 = vmatpush1.msra.mxu0 0.0
    %818 = vmatprep.subr.mxu0 0.0
    %819 = vmatpush1.msra.mxu0 0.0
    %820 = vmatprep.subr.mxu0 0.0
    %821 = vmatpush1.msra.mxu0 0.0
    %822 = vmatprep.subr.mxu0 0.0
    %823 = vmatpush1.msra.mxu0 0.0
    %824 = vmatprep.subr.mxu0 0.0
    %825 = vmatpush1.msra.mxu0 0.0
    %826 = vmatprep.subr.mxu0 0.0
    %827 = vmatpush1.msra.mxu0 0.0
    %828 = vmatprep.subr.mxu0 0.0
    %829 = vmatpush1.msra.mxu0 0.0
    %830 = vmatprep.subr.mxu0 0.0
    %831 = vmatpush1.msra.mxu0 0.0
    %832 = vmatprep.mubr.f32.mxu0 0.0
    %833 = vmatmul.mubr.f32.gmra.mrb[0].mxu0 %v764
    %v834 = vpop.f32.mrb[0].mxu0
    %v835 = vadd.f32 %v754, %v834
    %v836 = vpop.f32.mrb[0].mxu0
    %837 = vmatprep.mubr.f32.mxu0 0.0
    %838 = vmatmul.mubr.f32.gmra.mrb[0].mxu0 %v766
    %v839 = vpop.f32.mrb[0].mxu0
    %v840 = vadd.f32 %v758, %v839
    %v841 = vpop.f32.mrb[0].mxu0
    %842 = vdwg.mxu0
    %843 = vrot.lane.b32.xlu0 %v406, 69
    %v844 = vpop.permute.xlu0 %843
    %845 = vrot.lane.b32.xlu0 %v407, 69
    %v846 = vpop.permute.xlu0 %845
    %v847 = vsel %vm65, %v844, 0
    %v849 = vsel %vm65, %v846, 0
    %851 = vmatprep.subr.mxu0 0.0
    %852 = vmatpush1.msra.mxu0 %v835
    %853 = vmatprep.subr.mxu0 0.0
    %854 = vmatpush1.msra.mxu0 %v840
    %855 = vmatprep.subr.mxu0 0.0
    %856 = vmatpush1.msra.mxu0 0.0
    %857 = vmatprep.subr.mxu0 0.0
    %858 = vmatpush1.msra.mxu0 0.0
    %859 = vmatprep.subr.mxu0 0.0
    %860 = vmatpush1.msra.mxu0 0.0
    %861 = vmatprep.subr.mxu0 0.0
    %862 = vmatpush1.msra.mxu0 0.0
    %863 = vmatprep.subr.mxu0 0.0
    %864 = vmatpush1.msra.mxu0 0.0
    %865 = vmatprep.subr.mxu0 0.0
    %866 = vmatpush1.msra.mxu0 0.0
    %867 = vmatprep.subr.mxu0 0.0
    %868 = vmatpush1.msra.mxu0 0.0
    %869 = vmatprep.subr.mxu0 0.0
    %870 = vmatpush1.msra.mxu0 0.0
    %871 = vmatprep.subr.mxu0 0.0
    %872 = vmatpush1.msra.mxu0 0.0
    %873 = vmatprep.subr.mxu0 0.0
    %874 = vmatpush1.msra.mxu0 0.0
    %875 = vmatprep.subr.mxu0 0.0
    %876 = vmatpush1.msra.mxu0 0.0
    %877 = vmatprep.subr.mxu0 0.0
    %878 = vmatpush1.msra.mxu0 0.0
    %879 = vmatprep.subr.mxu0 0.0
    %880 = vmatpush1.msra.mxu0 0.0
    %881 = vmatprep.subr.mxu0 0.0
    %882 = vmatpush1.msra.mxu0 0.0
    %883 = vmatprep.subr.mxu0 0.0
    %884 = vmatpush1.msra.mxu0 0.0
    %885 = vmatprep.subr.mxu0 0.0
    %886 = vmatpush1.msra.mxu0 0.0
    %887 = vmatprep.subr.mxu0 0.0
    %888 = vmatpush1.msra.mxu0 0.0
    %889 = vmatprep.subr.mxu0 0.0
    %890 = vmatpush1.msra.mxu0 0.0
    %891 = vmatprep.subr.mxu0 0.0
    %892 = vmatpush1.msra.mxu0 0.0
    %893 = vmatprep.subr.mxu0 0.0
    %894 = vmatpush1.msra.mxu0 0.0
    %895 = vmatprep.subr.mxu0 0.0
    %896 = vmatpush1.msra.mxu0 0.0
    %897 = vmatprep.subr.mxu0 0.0
    %898 = vmatpush1.msra.mxu0 0.0
    %899 = vmatprep.subr.mxu0 0.0
    %900 = vmatpush1.msra.mxu0 0.0
    %901 = vmatprep.subr.mxu0 0.0
    %902 = vmatpush1.msra.mxu0 0.0
    %903 = vmatprep.subr.mxu0 0.0
    %904 = vmatpush1.msra.mxu0 0.0
    %905 = vmatprep.subr.mxu0 0.0
    %906 = vmatpush1.msra.mxu0 0.0
    %907 = vmatprep.subr.mxu0 0.0
    %908 = vmatpush1.msra.mxu0 0.0
    %909 = vmatprep.subr.mxu0 0.0
    %910 = vmatpush1.msra.mxu0 0.0
    %911 = vmatprep.subr.mxu0 0.0
    %912 = vmatpush1.msra.mxu0 0.0
    %913 = vmatprep.subr.mxu0 0.0
    %914 = vmatpush1.msra.mxu0 0.0
    %915 = vmatprep.mubr.f32.mxu0 0.0
    %916 = vmatmul.mubr.f32.gmra.mrb[0].mxu0 %v847
    %v917 = vpop.f32.mrb[0].mxu0
    %v918 = vadd.f32 0.0, %v917
    %v919 = vpop.f32.mrb[0].mxu0
    %920 = vmatprep.mubr.f32.mxu0 0.0
    %921 = vmatmul.mubr.f32.gmra.mrb[0].mxu0 %v849
    %v922 = vpop.f32.mrb[0].mxu0
    %v923 = vadd.f32 0.0, %v922
    %v924 = vpop.f32.mrb[0].mxu0
    %925 = vdwg.mxu0
    %v926 = vsel %vm65, %v918, 0.0
    %927 = vadd.xlane.f32.xlu0 %v926
    %v928 = vpop.xlane.xlu0 %927
    %v929 = vsel %vm65, %v923, 0.0
    %930 = vadd.xlane.f32.xlu0 %v929
    %v931 = vpop.xlane.xlu0 %930
    %v932 = vmul.f32 %v928, %v270
    %v933 = vmul.f32 %v931, %v270
    %v934 = vsub.f32 %v835, %v932
    %v935 = vsub.f32 %v840, %v933
    %v936 = vmul.f32 %v934, %v934
    %v937 = vmul.f32 %v935, %v935
    %938 = vmatprep.subr.mxu0 0.0
    %939 = vmatpush1.msra.mxu0 %v936
    %940 = vmatprep.subr.mxu0 0.0
    %941 = vmatpush1.msra.mxu0 %v937
    %942 = vmatprep.subr.mxu0 0.0
    %943 = vmatpush1.msra.mxu0 0.0
    %944 = vmatprep.subr.mxu0 0.0
    %945 = vmatpush1.msra.mxu0 0.0
    %946 = vmatprep.subr.mxu0 0.0
    %947 = vmatpush1.msra.mxu0 0.0
    %948 = vmatprep.subr.mxu0 0.0
    %949 = vmatpush1.msra.mxu0 0.0
    %950 = vmatprep.subr.mxu0 0.0
    %951 = vmatpush1.msra.mxu0 0.0
    %952 = vmatprep.subr.mxu0 0.0
    %953 = vmatpush1.msra.mxu0 0.0
    %954 = vmatprep.subr.mxu0 0.0
    %955 = vmatpush1.msra.mxu0 0.0
    %956 = vmatprep.subr.mxu0 0.0
    %957 = vmatpush1.msra.mxu0 0.0
    %958 = vmatprep.subr.mxu0 0.0
    %959 = vmatpush1.msra.mxu0 0.0
    %960 = vmatprep.subr.mxu0 0.0
    %961 = vmatpush1.msra.mxu0 0.0
    %962 = vmatprep.subr.mxu0 0.0
    %963 = vmatpush1.msra.mxu0 0.0
    %964 = vmatprep.subr.mxu0 0.0
    %965 = vmatpush1.msra.mxu0 0.0
    %966 = vmatprep.subr.mxu0 0.0
    %967 = vmatpush1.msra.mxu0 0.0
    %968 = vmatprep.subr.mxu0 0.0
    %969 = vmatpush1.msra.mxu0 0.0
    %970 = vmatprep.subr.mxu0 0.0
    %971 = vmatpush1.msra.mxu0 0.0
    %972 = vmatprep.subr.mxu0 0.0
    %973 = vmatpush1.msra.mxu0 0.0
    %974 = vmatprep.subr.mxu0 0.0
    %975 = vmatpush1.msra.mxu0 0.0
    %976 = vmatprep.subr.mxu0 0.0
    %977 = vmatpush1.msra.mxu0 0.0
    %978 = vmatprep.subr.mxu0 0.0
    %979 = vmatpush1.msra.mxu0 0.0
    %980 = vmatprep.subr.mxu0 0.0
    %981 = vmatpush1.msra.mxu0 0.0
    %982 = vmatprep.subr.mxu0 0.0
    %983 = vmatpush1.msra.mxu0 0.0
    %984 = vmatprep.subr.mxu0 0.0
    %985 = vmatpush1.msra.mxu0 0.0
    %986 = vmatprep.subr.mxu0 0.0
    %987 = vmatpush1.msra.mxu0 0.0
    %988 = vmatprep.subr.mxu0 0.0
    %989 = vmatpush1.msra.mxu0 0.0
    %990 = vmatprep.subr.mxu0 0.0
    %991 = vmatpush1.msra.mxu0 0.0
    %992 = vmatprep.subr.mxu0 0.0
    %993 = vmatpush1.msra.mxu0 0.0
    %994 = vmatprep.subr.mxu0 0.0
    %995 = vmatpush1.msra.mxu0 0.0
    %996 = vmatprep.subr.mxu0 0.0
    %997 = vmatpush1.msra.mxu0 0.0
    %998 = vmatprep.subr.mxu0 0.0
    %999 = vmatpush1.msra.mxu0 0.0
    %1000 = vmatprep.subr.mxu0 0.0
    %1001 = vmatpush1.msra.mxu0 0.0
    %1002 = vmatprep.mubr.f32.mxu0 0.0
    %1003 = vmatmul.mubr.f32.gmra.mrb[0].mxu0 %v847
    %v1004 = vpop.f32.mrb[0].mxu0
    %v1005 = vadd.f32 0.0, %v1004
    %v1006 = vpop.f32.mrb[0].mxu0
    %1007 = vmatprep.mubr.f32.mxu0 0.0
    %1008 = vmatmul.mubr.f32.gmra.mrb[0].mxu0 %v849
    %v1009 = vpop.f32.mrb[0].mxu0
    %v1010 = vadd.f32 0.0, %v1009
    %v1011 = vpop.f32.mrb[0].mxu0
    %1012 = vdwg.mxu0
    %v1013 = vsel %vm65, %v1005, 0.0
    %1014 = vadd.xlane.f32.xlu0 %v1013
    %v1015 = vpop.xlane.xlu0 %1014
    %v1016 = vsel %vm65, %v1010, 0.0
    %1017 = vadd.xlane.f32.xlu0 %v1016
    %v1018 = vpop.xlane.xlu0 %1017
    %v1019 = vmul.f32 %v1015, %v270
    %v1020 = vmul.f32 %v1018, %v270
    %1021 = vset.pattern.permute.xlu0 57
    %1022 = vperm.xlu0 %1021, %v406
    %v1023 = vpop.permute.xlu0 %1022
    %1025 = vset.pattern.permute.xlu0 57
    %1026 = vperm.xlu0 %1025, %v407
    %v1027 = vpop.permute.xlu0 %1026
    %v1029 = vmul.f32 %v1023, %v934
    %v1030 = vmul.f32 %v1027, %v935
    %v1031 = vadd.f32 %v1019, 1e-05
    %v1032 = vadd.f32 %v1020, 1e-05
    %v1033 = vrsqrt.pop %v1031
    %v1034 = vrsqrt.pop %v1032
    %v1035 = vmul.f32 %v1029, %v1033
    %v1036 = vmul.f32 %v1030, %v1034
    %1037 = vset.pattern.permute.xlu0 58
    %1038 = vperm.xlu0 %1037, %v406
    %v1039 = vpop.permute.xlu0 %1038
    %1041 = vset.pattern.permute.xlu0 58
    %1042 = vperm.xlu0 %1041, %v407
    %v1043 = vpop.permute.xlu0 %1042
    %v1045 = vadd.f32 %v1035, %v1039
    %v1046 = vadd.f32 %v1036, %v1043
    %v1047 = vtanh.pop %v1045
    %v1048 = vtanh.pop %v1046
    %v1049 = vld [vmem:[#allocation7] sm:$0xff]
    %v1050 = vld [vmem:[#allocation7 + $0x8] sm:$0x3]
    %1052 = vset.pattern.permute.xlu0 91
    %1053 = vperm.xlu0 %1052, %v1049
    %v1054 = vpop.permute.xlu0 %1053
    %1057 = vset.pattern.permute.xlu0 91
    %1058 = vperm.xlu0 %1057, %v1050
    %v1059 = vpop.permute.xlu0 %1058
    %1061 = vrot.lane.b32.xlu0 %v1049, 53
    %v1062 = vpop.permute.xlu0 %1061
    %1063 = vrot.lane.b32.xlu0 %v1050, 53
    %v1064 = vpop.permute.xlu0 %1063
    %v1065 = vsel %vm65, %v1062, 0
    %v1067 = vsel %vm65, %v1064, 0
    %1069 = vmatprep.subr.mxu0 0.0
    %1070 = vmatpush1.msra.mxu0 %v1047
    %1071 = vmatprep.subr.mxu0 0.0
    %1072 = vmatpush1.msra.mxu0 %v1048
    %1073 = vmatprep.subr.mxu0 0.0
    %1074 = vmatpush1.msra.mxu0 0.0
    %1075 = vmatprep.subr.mxu0 0.0
    %1076 = vmatpush1.msra.mxu0 0.0
    %1077 = vmatprep.subr.mxu0 0.0
    %1078 = vmatpush1.msra.mxu0 0.0
    %1079 = vmatprep.subr.mxu0 0.0
    %1080 = vmatpush1.msra.mxu0 0.0
    %1081 = vmatprep.subr.mxu0 0.0
    %1082 = vmatpush1.msra.mxu0 0.0
    %1083 = vmatprep.subr.mxu0 0.0
    %1084 = vmatpush1.msra.mxu0 0.0
    %1085 = vmatprep.subr.mxu0 0.0
    %1086 = vmatpush1.msra.mxu0 0.0
    %1087 = vmatprep.subr.mxu0 0.0
    %1088 = vmatpush1.msra.mxu0 0.0
    %1089 = vmatprep.subr.mxu0 0.0
    %1090 = vmatpush1.msra.mxu0 0.0
    %1091 = vmatprep.subr.mxu0 0.0
    %1092 = vmatpush1.msra.mxu0 0.0
    %1093 = vmatprep.subr.mxu0 0.0
    %1094 = vmatpush1.msra.mxu0 0.0
    %1095 = vmatprep.subr.mxu0 0.0
    %1096 = vmatpush1.msra.mxu0 0.0
    %1097 = vmatprep.subr.mxu0 0.0
    %1098 = vmatpush1.msra.mxu0 0.0
    %1099 = vmatprep.subr.mxu0 0.0
    %1100 = vmatpush1.msra.mxu0 0.0
    %1101 = vmatprep.subr.mxu0 0.0
    %1102 = vmatpush1.msra.mxu0 0.0
    %1103 = vmatprep.subr.mxu0 0.0
    %1104 = vmatpush1.msra.mxu0 0.0
    %1105 = vmatprep.subr.mxu0 0.0
    %1106 = vmatpush1.msra.mxu0 0.0
    %1107 = vmatprep.subr.mxu0 0.0
    %1108 = vmatpush1.msra.mxu0 0.0
    %1109 = vmatprep.subr.mxu0 0.0
    %1110 = vmatpush1.msra.mxu0 0.0
    %1111 = vmatprep.subr.mxu0 0.0
    %1112 = vmatpush1.msra.mxu0 0.0
    %1113 = vmatprep.subr.mxu0 0.0
    %1114 = vmatpush1.msra.mxu0 0.0
    %1115 = vmatprep.subr.mxu0 0.0
    %1116 = vmatpush1.msra.mxu0 0.0
    %1117 = vmatprep.subr.mxu0 0.0
    %1118 = vmatpush1.msra.mxu0 0.0
    %1119 = vmatprep.subr.mxu0 0.0
    %1120 = vmatpush1.msra.mxu0 0.0
    %1121 = vmatprep.subr.mxu0 0.0
    %1122 = vmatpush1.msra.mxu0 0.0
    %1123 = vmatprep.subr.mxu0 0.0
    %1124 = vmatpush1.msra.mxu0 0.0
    %1125 = vmatprep.subr.mxu0 0.0
    %1126 = vmatpush1.msra.mxu0 0.0
    %1127 = vmatprep.subr.mxu0 0.0
    %1128 = vmatpush1.msra.mxu0 0.0
    %1129 = vmatprep.subr.mxu0 0.0
    %1130 = vmatpush1.msra.mxu0 0.0
    %1131 = vmatprep.subr.mxu0 0.0
    %1132 = vmatpush1.msra.mxu0 0.0
    %1133 = vmatprep.mubr.f32.mxu0 0.0
    %1134 = vmatmul.mubr.f32.gmra.mrb[0].mxu0 %v1065
    %v1135 = vpop.f32.mrb[0].mxu0
    %v1136 = vadd.f32 %v1054, %v1135
    %v1137 = vpop.f32.mrb[0].mxu0
    %1138 = vmatprep.mubr.f32.mxu0 0.0
    %1139 = vmatmul.mubr.f32.gmra.mrb[0].mxu0 %v1067
    %v1140 = vpop.f32.mrb[0].mxu0
    %v1141 = vadd.f32 %v1059, %v1140
    %v1142 = vpop.f32.mrb[0].mxu0
    %1143 = vdwg.mxu0
    %vm1144 = vcmask 126976
    %v1145 = vsel %vm1144, %v1136, -inf
    %v1146 = vrot.slane %v1145, 4
    %v1147 = vmax.f32 %v1145, %v1146
    %v1148 = vrot.slane %v1147, 2
    %v1149 = vmax.f32 %v1147, %v1148
    %v1150 = vrot.slane %v1149, 1
    %v1151 = vmax.f32 %v1149, %v1150
    %v1152 = vsub.f32 %v1136, %v1151
    %v1153 = vmul.f32 %v1152, 1.442695
    %v1154 = vpow.pop %v1153
    %v1155 = vsel %vm1144, %v1154, 0.0
    %v1156 = vrot.slane %v1155, 4
    %v1157 = vadd.f32 %v1155, %v1156
    %v1158 = vrot.slane %v1157, 2
    %v1159 = vadd.f32 %v1157, %v1158
    %v1160 = vrot.slane %v1159, 1
    %v1161 = vadd.f32 %v1159, %v1160
    %v1162 = vlog2.pop %v1161
    %v1163 = vmul.f32 %v1162, 0.6931472
    %v1164 = vsub.f32 %v1152, %v1163
    %1165 = vst.msk [vmem:[#allocation8] sm:$0x1f] %vm1144, %v1164
    %vm1166 = vcmask 130053
    %v1167 = vsel %vm1166, %v1136, -inf
    %vm1168 = vcmask 123904
    %v1169 = vsel %vm1168, %v1141, -inf
    %v1170 = vmax.f32 %v1167, %v1169
    %v1171 = vrot.slane %v1170, 4
    %v1172 = vmax.f32 %v1170, %v1171
    %v1173 = vrot.slane %v1172, 2
    %v1174 = vmax.f32 %v1172, %v1173
    %v1175 = vrot.slane %v1174, 1
    %v1176 = vmax.f32 %v1174, %v1175
    %v1177 = vsub.f32 %v1136, %v1176
    %v1178 = vsub.f32 %v1141, %v1176
    %v1179 = vmul.f32 %v1177, 1.442695
    %v1180 = vpow.pop %v1179
    %v1181 = vmul.f32 %v1178, 1.442695
    %v1182 = vpow.pop %v1181
    %vm1185 = vcmask 1042432
    %v1186 = vrot.slane %v1180, 5
    %v1187 = vrot.slane %v1182, 5
    %v1188 = vsel %vm1185, %v1186, %v1187
    %v1190 = vsel %vm1144, %v1188, 0.0
    %v1191 = vrot.slane %v1190, 4
    %v1192 = vadd.f32 %v1190, %v1191
    %v1193 = vrot.slane %v1192, 2
    %v1194 = vadd.f32 %v1192, %v1193
    %v1195 = vrot.slane %v1194, 1
    %v1196 = vadd.f32 %v1194, %v1195
    %v1197 = vlog2.pop %v1196
    %v1198 = vmul.f32 %v1197, 0.6931472
    %v1199 = vsub.f32 %v1177, %v1198
    %v1200 = vsub.f32 %v1178, %v1198
    %1201 = vst.msk [vmem:[#allocation8] sm:$0xe0] %vm1166, %v1199
    %1202 = vst.msk [vmem:[#allocation8 + $0x8] sm:$0x3] %vm1168, %v1200
    // Predicated region
    $region26: #{tpu_custom_call.1} parent=1 // pred_check
      _
    $region27: #{tpu_custom_call.1} parent=1 // pred_check_branch
      %1204 = sbr.rel (0) target = $region29
    $region28: #{tpu_custom_call.1} parent=1 // pred_region
      %s1206 = ssub.s32 256, 256
      %1207 = vsyncadd [#allocation4], %s1206
      %s1208 = sshll.u32 [#allocation8], 4
      %s1209 = int_to_ptr.vmem [resolvable:$true] %s1208
      %1214 = dma.vmem_to_hbm [thread:$0]  %s1209, 256, %s3, [#allocation4], 128, 128, 8
    $region29: #{tpu_custom_call.1} parent=1 // pred_fallthru
      _
    // Predicated region
    $region30: #{tpu_custom_call.1} parent=1 // pred_check
      _
    $region31: #{tpu_custom_call.1} parent=1 // pred_check_branch
      %1216 = sbr.rel (0) target = $region33
    $region32: #{tpu_custom_call.1} parent=1 // pred_region
      %1217 = dma.done [#allocation4], 256
    $region33: #{tpu_custom_call.1} parent=1 // pred_fallthru
      _
    %1218 = vsyncpa [#allocation3], 1
    %1219 = vsyncpa [#allocation6], 1
    %1220 = vsyncpa [#allocation4], 1

</llo_original>
